<compile_context>
chip_gen: v7x
topology: tpu7x:2x2x1
jax: 0.10.0
libtpu: 0.0.40
codegen_flags: <defaults>
</compile_context>

<pallas_src>
import functools

import numpy as np
import jax
import jax.numpy as jnp
from jax.experimental import pallas as pl
from jax.experimental.pallas import tpu as pltpu


def _round_up(x, m):
    return (x + m - 1) // m * m


def _block_b_kernel(x_ref, w1_ref, w2_ref, b1_ref, b2_ref, m_ref,
                    o_ref, pad_ref, *, W, PAD, M0):
    # x_ref  : (1, Cp, M0)  f32   one image, channels x flattened spatial (M0 = H*W)
    # w*_ref : (Cp, 9*Cp)   bf16  im2col-packed conv weights (BN scale folded in)
    # b*_ref : (Cp, 1)      f32   folded BN bias
    # m_ref  : (2, M0)      f32   per-position validity masks for dw=0 / dw=2 taps
    # o_ref  : (1, Cp, M0)  f32
    # pad_ref: (2, Cp, L)   f32   scratch: slot 0 = x, slot 1 = h1, with zero lane
    #                             borders of width PAD on both sides (L = M0 + 2*PAD)
    Cp = x_ref.shape[1]
    L = pad_ref.shape[2]

    # Zero only the lane borders (interior is fully overwritten below).  Re-zeroed
    # every step so the kernel stays correct when the batch axis is split across
    # TensorCores ("parallel").
    zero_border = jnp.zeros((2, Cp, PAD), jnp.float32)
    pad_ref[:, :, 0:PAD] = zero_border
    pad_ref[:, :, PAD + M0:L] = zero_border

    m_left = m_ref[0:1, :]    # (1, M0): 0 where w == 0      (left neighbour invalid)
    m_right = m_ref[1:2, :]   # (1, M0): 0 where w == W - 1  (right neighbour invalid)

    def conv3x3(slot, w_r):
        # Build the (9*Cp, M0) im2col operand from 9 shifted reads of the
        # zero-bordered scratch; H-boundary handled by the zero borders,
        # W-boundary by the dw masks.  Single bf16 MXU matmul, f32 accumulation.
        pieces = []
        for dh in range(3):
            for dw in range(3):
                off = PAD + (dh - 1) * W + (dw - 1)
                p = pad_ref[slot, :, off:off + M0]          # (Cp, M0)
                if dw == 0:
                    p = p * m_left
                elif dw == 2:
                    p = p * m_right
                pieces.append(p)
        col = jnp.concatenate(pieces, axis=0).astype(jnp.bfloat16)   # (9*Cp, M0)
        return jnp.dot(w_r, col, preferred_element_type=jnp.float32)  # (Cp, M0) f32

    x = x_ref[0]                                   # (Cp, M0) f32 (also the residual)
    pad_ref[0, :, PAD:PAD + M0] = x                # lane-aligned interior store

    # conv1 (+ folded bn1 scale) -> bias -> ReLU
    h1 = jnp.maximum(conv3x3(0, w1_ref[...]) + b1_ref[...], 0.0)
    pad_ref[1, :, PAD:PAD + M0] = h1

    # conv2 (+ folded bn2 scale) -> bias -> residual -> ReLU
    y2 = conv3x3(1, w2_ref[...]) + b2_ref[...]
    o_ref[0] = jnp.maximum(y2 + x, 0.0)            # lane-dense (Cp, M0) store


def block_b(x_nchw, w1, w2, gamma1, beta1, mean1, var1,
            gamma2, beta2, mean2, var2, eps=1e-5):
    """Fused BlockB forward.  x_nchw: (N, C, H, W) f32; w1/w2 in HWIO layout."""
    N, C, H, W = x_nchw.shape
    P = w1.shape[3]
    assert C == P, "identity residual requires inplanes == planes"

    Cp = _round_up(max(C, P), 8)          # sublane-aligned channel count
    M0 = H * W                            # flattened spatial (lane axis)
    PAD = _round_up(W + 1, 128)           # zero border, lane-aligned interior offset
    L = M0 + 2 * PAD

    # ---- fold eval-mode BN: scale into conv weights, bias kept separate ----
    s1 = gamma1 / jnp.sqrt(var1 + eps)
    b1 = beta1 - mean1 * s1
    s2 = gamma2 / jnp.sqrt(var2 + eps)
    b2 = beta2 - mean2 * s2
    w1f = w1 * s1[None, None, None, :]
    w2f = w2 * s2[None, None, None, :]

    def pack_w(w):  # (3,3,ci,co) -> (Cp, 9*Cp) bf16, row p / col (tap*Cp + c)
        ci, co = w.shape[2], w.shape[3]
        wp = jnp.pad(w, ((0, 0), (0, 0), (0, Cp - ci), (0, Cp - co)))
        return wp.transpose(3, 0, 1, 2).reshape(Cp, 9 * Cp).astype(jnp.bfloat16)

    w1r = pack_w(w1f)
    w2r = pack_w(w2f)
    b1p = jnp.pad(b1, (0, Cp - P)).reshape(Cp, 1).astype(jnp.float32)
    b2p = jnp.pad(b2, (0, Cp - P)).reshape(Cp, 1).astype(jnp.float32)

    # channel pad (sublane alignment) + free NCHW reshape; no spatial padding in HBM
    xf = jnp.pad(x_nchw, ((0, 0), (0, Cp - C), (0, 0), (0, 0)))
    xf = xf.reshape(N, Cp, M0).astype(jnp.float32)

    # per-output-position validity masks for the left / right conv taps
    q = np.arange(M0)
    masks = jnp.asarray(np.stack([(q % W != 0).astype(np.float32),
                                  (q % W != W - 1).astype(np.float32)], axis=0))

    kernel = functools.partial(_block_b_kernel, W=W, PAD=PAD, M0=M0)

    grid_spec = pltpu.PrefetchScalarGridSpec(
        num_scalar_prefetch=0,
        grid=(N,),
        in_specs=[
            pl.BlockSpec((1, Cp, M0), lambda n: (n, 0, 0)),     # x
            pl.BlockSpec((Cp, 9 * Cp), lambda n: (0, 0)),       # w1 (packed)
            pl.BlockSpec((Cp, 9 * Cp), lambda n: (0, 0)),       # w2 (packed)
            pl.BlockSpec((Cp, 1), lambda n: (0, 0)),            # b1
            pl.BlockSpec((Cp, 1), lambda n: (0, 0)),            # b2
            pl.BlockSpec((2, M0), lambda n: (0, 0)),            # masks
        ],
        out_specs=pl.BlockSpec((1, Cp, M0), lambda n: (n, 0, 0)),
        scratch_shapes=[pltpu.VMEM((2, Cp, L), jnp.float32)],
    )

    out = pl.pallas_call(
        kernel,
        out_shape=jax.ShapeDtypeStruct((N, Cp, M0), jnp.float32),
        grid_spec=grid_spec,
        compiler_params=pltpu.CompilerParams(
            dimension_semantics=("parallel",),
            vmem_limit_bytes=32 * 1024 * 1024,
        ),
    )(xf, w1r, w2r, b1p, b2p, masks)

    # drop padded channels, restore NCHW
    return out[:, :P, :].reshape(N, P, H, W)


def block_b_reference(x_nchw, w1, w2, gamma1, beta1, mean1, var1,
                      gamma2, beta2, mean2, var2, eps=1e-5):
    """Pure-JAX reference (lax conv, f32) for validation."""
    def conv(x, w):
        return jax.lax.conv_general_dilated(
            x, w, window_strides=(1, 1), padding="SAME",
            dimension_numbers=("NCHW", "HWIO", "NCHW"))

    def bn(x, g, b, m, v):
        g = g.reshape(1, -1, 1, 1)
        b = b.reshape(1, -1, 1, 1)
        m = m.reshape(1, -1, 1, 1)
        v = v.reshape(1, -1, 1, 1)
        return (x - m) / jnp.sqrt(v + eps) * g + b

    h = jax.nn.relu(bn(conv(x_nchw, w1), gamma1, beta1, mean1, var1))
    h = bn(conv(h, w2), gamma2, beta2, mean2, var2)
    return jax.nn.relu(h + x_nchw)


if __name__ == "__main__":
    # small shapes consistent with the module (inplanes == planes, stride == 1)
    N, C, H, W = 2, 4, 16, 16          # PyTorch NCHW input (2, 4, 16, 16)
    planes = C

    key = jax.random.PRNGKey(0)
    keys = jax.random.split(key, 11)

    x = jax.random.normal(keys[0], (N, C, H, W), jnp.float32)

    # conv weights in HWIO layout, deterministic init
    w1 = jax.random.normal(keys[1], (3, 3, C, planes), jnp.float32) * 0.1
    w2 = jax.random.normal(keys[2], (3, 3, planes, planes), jnp.float32) * 0.1

    # BN params (eval-mode running stats, deterministic)
    gamma1 = 1.0 + 0.1 * jax.random.normal(keys[3], (planes,), jnp.float32)
    beta1 = 0.1 * jax.random.normal(keys[4], (planes,), jnp.float32)
    mean1 = 0.1 * jax.random.normal(keys[5], (planes,), jnp.float32)
    var1 = 1.0 + 0.1 * jnp.abs(jax.random.normal(keys[6], (planes,), jnp.float32))
    gamma2 = 1.0 + 0.1 * jax.random.normal(keys[7], (planes,), jnp.float32)
    beta2 = 0.1 * jax.random.normal(keys[8], (planes,), jnp.float32)
    mean2 = 0.1 * jax.random.normal(keys[9], (planes,), jnp.float32)
    var2 = 1.0 + 0.1 * jnp.abs(jax.random.normal(keys[10], (planes,), jnp.float32))

    out = block_b(x, w1, w2, gamma1, beta1, mean1, var1,
                  gamma2, beta2, mean2, var2)
    out = jax.block_until_ready(out)

    ref = block_b_reference(x, w1, w2, gamma1, beta1, mean1, var1,
                            gamma2, beta2, mean2, var2)
    # bf16 MXU operands (f32 accumulation) => loosened tolerance vs f32 reference
    np.testing.assert_allclose(np.asarray(out), np.asarray(ref),
                               rtol=5e-2, atol=5e-2)

    # TODO(synk): training-mode BatchNorm (batch statistics + running-stat updates) is not
    # implemented; kernel uses eval-mode BN folded into conv weights / bias.
    print("KERNEL_OK")
</pallas_src>

<mosaic_0001>
module attributes {stable_mosaic.version = 11 : i64} {
  func.func @_block_b_kernel(%arg0: i32, %arg1: memref<1x8x256xf32, #tpu.memory_space<vmem>>, %arg2: memref<8x72xbf16, #tpu.memory_space<vmem>>, %arg3: memref<8x72xbf16, #tpu.memory_space<vmem>>, %arg4: memref<8x1xf32, #tpu.memory_space<vmem>>, %arg5: memref<8x1xf32, #tpu.memory_space<vmem>>, %arg6: memref<2x256xf32, #tpu.memory_space<vmem>>, %arg7: memref<1x8x256xf32, #tpu.memory_space<vmem>>, %arg8: memref<2x8x512xf32, #tpu.memory_space<vmem>>) attributes {dimension_semantics = [#tpu.dimension_semantics<parallel>], iteration_bounds = array<i64: 2>, scalar_prefetch = 0 : i64, scratch_operands = 1 : i64, tpu.core_type = #tpu.core_type<tc>, window_params = [{transform_indices = @transform_0, window_bounds = array<i64: 1, 8, 256>}, {pipeline_mode = #tpu.pipeline_mode<synchronous>, transform_indices = @transform_1, window_bounds = array<i64: 8, 72>}, {pipeline_mode = #tpu.pipeline_mode<synchronous>, transform_indices = @transform_2, window_bounds = array<i64: 8, 72>}, {pipeline_mode = #tpu.pipeline_mode<synchronous>, transform_indices = @transform_3, window_bounds = array<i64: 8, 1>}, {pipeline_mode = #tpu.pipeline_mode<synchronous>, transform_indices = @transform_4, window_bounds = array<i64: 8, 1>}, {pipeline_mode = #tpu.pipeline_mode<synchronous>, transform_indices = @transform_5, window_bounds = array<i64: 2, 256>}, {transform_indices = @transform_6, window_bounds = array<i64: 1, 8, 256>}]} {
    %cst = arith.constant 0.000000e+00 : f32
    %0 = vector.broadcast %cst : f32 to vector<2x8x128xf32>
    %c0 = arith.constant 0 : index
    %c0_0 = arith.constant 0 : index
    %c0_1 = arith.constant 0 : index
    %1 = vector.load %arg8[%c0, %c0_0, %c0_1] : memref<2x8x512xf32, #tpu.memory_space<vmem>>, vector<2x8x128xf32>
    tpu.vector_store %arg8[%c0, %c0_0, %c0_1], %0 {strides = array<i32>} : memref<2x8x512xf32, #tpu.memory_space<vmem>>, vector<2x8x128xf32>,
    %c0_2 = arith.constant 0 : index
    %c0_3 = arith.constant 0 : index
    %c384 = arith.constant 384 : index
    %2 = vector.load %arg8[%c0_2, %c0_3, %c384] : memref<2x8x512xf32, #tpu.memory_space<vmem>>, vector<2x8x128xf32>
    tpu.vector_store %arg8[%c0_2, %c0_3, %c384], %0 {strides = array<i32>} : memref<2x8x512xf32, #tpu.memory_space<vmem>>, vector<2x8x128xf32>,
    %c0_4 = arith.constant 0 : index
    %c0_5 = arith.constant 0 : index
    %3 = vector.load %arg6[%c0_4, %c0_5] : memref<2x256xf32, #tpu.memory_space<vmem>>, vector<1x256xf32>
    %c1 = arith.constant 1 : index
    %c0_6 = arith.constant 0 : index
    %4 = vector.load %arg6[%c1, %c0_6] : memref<2x256xf32, #tpu.memory_space<vmem>>, vector<1x256xf32>
    %c0_7 = arith.constant 0 : index
    %c0_8 = arith.constant 0 : index
    %c0_9 = arith.constant 0 : index
    %5 = vector.load %arg1[%c0_7, %c0_8, %c0_9] : memref<1x8x256xf32, #tpu.memory_space<vmem>>, vector<1x8x256xf32>
    %6 = vector.shape_cast %5 : vector<1x8x256xf32> to vector<8x256xf32>
    %c0_10 = arith.constant 0 : index
    %c0_11 = arith.constant 0 : index
    %c128 = arith.constant 128 : index
    %7 = vector.load %arg8[%c0_10, %c0_11, %c128] : memref<2x8x512xf32, #tpu.memory_space<vmem>>, vector<1x8x256xf32>
    %8 = vector.shape_cast %7 : vector<1x8x256xf32> to vector<8x256xf32>
    %9 = vector.shape_cast %6 : vector<8x256xf32> to vector<1x8x256xf32>
    tpu.vector_store %arg8[%c0_10, %c0_11, %c128], %9 {strides = array<i32>} : memref<2x8x512xf32, #tpu.memory_space<vmem>>, vector<1x8x256xf32>,
    %c0_12 = arith.constant 0 : index
    %c0_13 = arith.constant 0 : index
    %10 = vector.load %arg2[%c0_12, %c0_13] : memref<8x72xbf16, #tpu.memory_space<vmem>>, vector<8x72xbf16>
    %c0_14 = arith.constant 0 : index
    %c0_15 = arith.constant 0 : index
    %c111 = arith.constant 111 : index
    %11 = vector.load %arg8[%c0_14, %c0_15, %c111] : memref<2x8x512xf32, #tpu.memory_space<vmem>>, vector<1x8x256xf32>
    %12 = vector.shape_cast %11 : vector<1x8x256xf32> to vector<8x256xf32>
    %13 = vector.broadcast %3 : vector<1x256xf32> to vector<8x256xf32>
    %14 = arith.mulf %12, %13 : vector<8x256xf32>
    %c0_16 = arith.constant 0 : index
    %c0_17 = arith.constant 0 : index
    %c112 = arith.constant 112 : index
    %15 = vector.load %arg8[%c0_16, %c0_17, %c112] : memref<2x8x512xf32, #tpu.memory_space<vmem>>, vector<1x8x256xf32>
    %16 = vector.shape_cast %15 : vector<1x8x256xf32> to vector<8x256xf32>
    %c0_18 = arith.constant 0 : index
    %c0_19 = arith.constant 0 : index
    %c113 = arith.constant 113 : index
    %17 = vector.load %arg8[%c0_18, %c0_19, %c113] : memref<2x8x512xf32, #tpu.memory_space<vmem>>, vector<1x8x256xf32>
    %18 = vector.shape_cast %17 : vector<1x8x256xf32> to vector<8x256xf32>
    %19 = vector.broadcast %4 : vector<1x256xf32> to vector<8x256xf32>
    %20 = arith.mulf %18, %19 : vector<8x256xf32>
    %c0_20 = arith.constant 0 : index
    %c0_21 = arith.constant 0 : index
    %c127 = arith.constant 127 : index
    %21 = vector.load %arg8[%c0_20, %c0_21, %c127] : memref<2x8x512xf32, #tpu.memory_space<vmem>>, vector<1x8x256xf32>
    %22 = vector.shape_cast %21 : vector<1x8x256xf32> to vector<8x256xf32>
    %23 = vector.broadcast %3 : vector<1x256xf32> to vector<8x256xf32>
    %24 = arith.mulf %22, %23 : vector<8x256xf32>
    %c0_22 = arith.constant 0 : index
    %c0_23 = arith.constant 0 : index
    %c128_24 = arith.constant 128 : index
    %25 = vector.load %arg8[%c0_22, %c0_23, %c128_24] : memref<2x8x512xf32, #tpu.memory_space<vmem>>, vector<1x8x256xf32>
    %26 = vector.shape_cast %25 : vector<1x8x256xf32> to vector<8x256xf32>
    %c0_25 = arith.constant 0 : index
    %c0_26 = arith.constant 0 : index
    %c129 = arith.constant 129 : index
    %27 = vector.load %arg8[%c0_25, %c0_26, %c129] : memref<2x8x512xf32, #tpu.memory_space<vmem>>, vector<1x8x256xf32>
    %28 = vector.shape_cast %27 : vector<1x8x256xf32> to vector<8x256xf32>
    %29 = vector.broadcast %4 : vector<1x256xf32> to vector<8x256xf32>
    %30 = arith.mulf %28, %29 : vector<8x256xf32>
    %c0_27 = arith.constant 0 : index
    %c0_28 = arith.constant 0 : index
    %c143 = arith.constant 143 : index
    %31 = vector.load %arg8[%c0_27, %c0_28, %c143] : memref<2x8x512xf32, #tpu.memory_space<vmem>>, vector<1x8x256xf32>
    %32 = vector.shape_cast %31 : vector<1x8x256xf32> to vector<8x256xf32>
    %33 = vector.broadcast %3 : vector<1x256xf32> to vector<8x256xf32>
    %34 = arith.mulf %32, %33 : vector<8x256xf32>
    %c0_29 = arith.constant 0 : index
    %c0_30 = arith.constant 0 : index
    %c144 = arith.constant 144 : index
    %35 = vector.load %arg8[%c0_29, %c0_30, %c144] : memref<2x8x512xf32, #tpu.memory_space<vmem>>, vector<1x8x256xf32>
    %36 = vector.shape_cast %35 : vector<1x8x256xf32> to vector<8x256xf32>
    %c0_31 = arith.constant 0 : index
    %c0_32 = arith.constant 0 : index
    %c145 = arith.constant 145 : index
    %37 = vector.load %arg8[%c0_31, %c0_32, %c145] : memref<2x8x512xf32, #tpu.memory_space<vmem>>, vector<1x8x256xf32>
    %38 = vector.shape_cast %37 : vector<1x8x256xf32> to vector<8x256xf32>
    %39 = vector.broadcast %4 : vector<1x256xf32> to vector<8x256xf32>
    %40 = arith.mulf %38, %39 : vector<8x256xf32>
    %41 = tpu.concatenate %14, %16, %20, %24, %26, %30, %34, %36, %40 in 0 : vector<8x256xf32>, vector<8x256xf32>, vector<8x256xf32>, vector<8x256xf32>, vector<8x256xf32>, vector<8x256xf32>, vector<8x256xf32>, vector<8x256xf32>, vector<8x256xf32> -> vector<72x256xf32>
    %42 = arith.truncf %41 : vector<72x256xf32> to vector<72x256xbf16>
    %cst_33 = arith.constant dense<0.000000e+00> : vector<8x256xf32>
    %43 = tpu.matmul %10, %42, %cst_33 {dimension_numbers = #tpu.dot_dimension_numbers<[1], [0], [0], [1], [0, 0, 1, 1], [], []>} : vector<8x72xbf16>, vector<72x256xbf16>, vector<8x256xf32> -> vector<8x256xf32>
    %c0_34 = arith.constant 0 : index
    %c0_35 = arith.constant 0 : index
    %44 = vector.load %arg4[%c0_34, %c0_35] : memref<8x1xf32, #tpu.memory_space<vmem>>, vector<8x1xf32>
    %45 = vector.broadcast %44 : vector<8x1xf32> to vector<8x256xf32>
    %46 = arith.addf %43, %45 : vector<8x256xf32>
    %cst_36 = arith.constant 0.000000e+00 : f32
    %47 = vector.broadcast %cst_36 : f32 to vector<8x256xf32>
    %48 = arith.maximumf %46, %47 : vector<8x256xf32>
    %c1_37 = arith.constant 1 : index
    %c0_38 = arith.constant 0 : index
    %c128_39 = arith.constant 128 : index
    %49 = vector.load %arg8[%c1_37, %c0_38, %c128_39] : memref<2x8x512xf32, #tpu.memory_space<vmem>>, vector<1x8x256xf32>
    %50 = vector.shape_cast %49 : vector<1x8x256xf32> to vector<8x256xf32>
    %51 = vector.shape_cast %48 : vector<8x256xf32> to vector<1x8x256xf32>
    tpu.vector_store %arg8[%c1_37, %c0_38, %c128_39], %51 {strides = array<i32>} : memref<2x8x512xf32, #tpu.memory_space<vmem>>, vector<1x8x256xf32>,
    %c0_40 = arith.constant 0 : index
    %c0_41 = arith.constant 0 : index
    %52 = vector.load %arg3[%c0_40, %c0_41] : memref<8x72xbf16, #tpu.memory_space<vmem>>, vector<8x72xbf16>
    %c1_42 = arith.constant 1 : index
    %c0_43 = arith.constant 0 : index
    %c111_44 = arith.constant 111 : index
    %53 = vector.load %arg8[%c1_42, %c0_43, %c111_44] : memref<2x8x512xf32, #tpu.memory_space<vmem>>, vector<1x8x256xf32>
    %54 = vector.shape_cast %53 : vector<1x8x256xf32> to vector<8x256xf32>
    %55 = vector.broadcast %3 : vector<1x256xf32> to vector<8x256xf32>
    %56 = arith.mulf %54, %55 : vector<8x256xf32>
    %c1_45 = arith.constant 1 : index
    %c0_46 = arith.constant 0 : index
    %c112_47 = arith.constant 112 : index
    %57 = vector.load %arg8[%c1_45, %c0_46, %c112_47] : memref<2x8x512xf32, #tpu.memory_space<vmem>>, vector<1x8x256xf32>
    %58 = vector.shape_cast %57 : vector<1x8x256xf32> to vector<8x256xf32>
    %c1_48 = arith.constant 1 : index
    %c0_49 = arith.constant 0 : index
    %c113_50 = arith.constant 113 : index
    %59 = vector.load %arg8[%c1_48, %c0_49, %c113_50] : memref<2x8x512xf32, #tpu.memory_space<vmem>>, vector<1x8x256xf32>
    %60 = vector.shape_cast %59 : vector<1x8x256xf32> to vector<8x256xf32>
    %61 = vector.broadcast %4 : vector<1x256xf32> to vector<8x256xf32>
    %62 = arith.mulf %60, %61 : vector<8x256xf32>
    %c1_51 = arith.constant 1 : index
    %c0_52 = arith.constant 0 : index
    %c127_53 = arith.constant 127 : index
    %63 = vector.load %arg8[%c1_51, %c0_52, %c127_53] : memref<2x8x512xf32, #tpu.memory_space<vmem>>, vector<1x8x256xf32>
    %64 = vector.shape_cast %63 : vector<1x8x256xf32> to vector<8x256xf32>
    %65 = vector.broadcast %3 : vector<1x256xf32> to vector<8x256xf32>
    %66 = arith.mulf %64, %65 : vector<8x256xf32>
    %c1_54 = arith.constant 1 : index
    %c0_55 = arith.constant 0 : index
    %c128_56 = arith.constant 128 : index
    %67 = vector.load %arg8[%c1_54, %c0_55, %c128_56] : memref<2x8x512xf32, #tpu.memory_space<vmem>>, vector<1x8x256xf32>
    %68 = vector.shape_cast %67 : vector<1x8x256xf32> to vector<8x256xf32>
    %c1_57 = arith.constant 1 : index
    %c0_58 = arith.constant 0 : index
    %c129_59 = arith.constant 129 : index
    %69 = vector.load %arg8[%c1_57, %c0_58, %c129_59] : memref<2x8x512xf32, #tpu.memory_space<vmem>>, vector<1x8x256xf32>
    %70 = vector.shape_cast %69 : vector<1x8x256xf32> to vector<8x256xf32>
    %71 = vector.broadcast %4 : vector<1x256xf32> to vector<8x256xf32>
    %72 = arith.mulf %70, %71 : vector<8x256xf32>
    %c1_60 = arith.constant 1 : index
    %c0_61 = arith.constant 0 : index
    %c143_62 = arith.constant 143 : index
    %73 = vector.load %arg8[%c1_60, %c0_61, %c143_62] : memref<2x8x512xf32, #tpu.memory_space<vmem>>, vector<1x8x256xf32>
    %74 = vector.shape_cast %73 : vector<1x8x256xf32> to vector<8x256xf32>
    %75 = vector.broadcast %3 : vector<1x256xf32> to vector<8x256xf32>
    %76 = arith.mulf %74, %75 : vector<8x256xf32>
    %c1_63 = arith.constant 1 : index
    %c0_64 = arith.constant 0 : index
    %c144_65 = arith.constant 144 : index
    %77 = vector.load %arg8[%c1_63, %c0_64, %c144_65] : memref<2x8x512xf32, #tpu.memory_space<vmem>>, vector<1x8x256xf32>
    %78 = vector.shape_cast %77 : vector<1x8x256xf32> to vector<8x256xf32>
    %c1_66 = arith.constant 1 : index
    %c0_67 = arith.constant 0 : index
    %c145_68 = arith.constant 145 : index
    %79 = vector.load %arg8[%c1_66, %c0_67, %c145_68] : memref<2x8x512xf32, #tpu.memory_space<vmem>>, vector<1x8x256xf32>
    %80 = vector.shape_cast %79 : vector<1x8x256xf32> to vector<8x256xf32>
    %81 = vector.broadcast %4 : vector<1x256xf32> to vector<8x256xf32>
    %82 = arith.mulf %80, %81 : vector<8x256xf32>
    %83 = tpu.concatenate %56, %58, %62, %66, %68, %72, %76, %78, %82 in 0 : vector<8x256xf32>, vector<8x256xf32>, vector<8x256xf32>, vector<8x256xf32>, vector<8x256xf32>, vector<8x256xf32>, vector<8x256xf32>, vector<8x256xf32>, vector<8x256xf32> -> vector<72x256xf32>
    %84 = arith.truncf %83 : vector<72x256xf32> to vector<72x256xbf16>
    %cst_69 = arith.constant dense<0.000000e+00> : vector<8x256xf32>
    %85 = tpu.matmul %52, %84, %cst_69 {dimension_numbers = #tpu.dot_dimension_numbers<[1], [0], [0], [1], [0, 0, 1, 1], [], []>} : vector<8x72xbf16>, vector<72x256xbf16>, vector<8x256xf32> -> vector<8x256xf32>
    %c0_70 = arith.constant 0 : index
    %c0_71 = arith.constant 0 : index
    %86 = vector.load %arg5[%c0_70, %c0_71] : memref<8x1xf32, #tpu.memory_space<vmem>>, vector<8x1xf32>
    %87 = vector.broadcast %86 : vector<8x1xf32> to vector<8x256xf32>
    %88 = arith.addf %85, %87 : vector<8x256xf32>
    %89 = arith.addf %88, %6 : vector<8x256xf32>
    %cst_72 = arith.constant 0.000000e+00 : f32
    %90 = vector.broadcast %cst_72 : f32 to vector<8x256xf32>
    %91 = arith.maximumf %89, %90 : vector<8x256xf32>
    %c0_73 = arith.constant 0 : index
    %c0_74 = arith.constant 0 : index
    %c0_75 = arith.constant 0 : index
    %92 = vector.load %arg7[%c0_73, %c0_74, %c0_75] : memref<1x8x256xf32, #tpu.memory_space<vmem>>, vector<1x8x256xf32>
    %93 = vector.shape_cast %92 : vector<1x8x256xf32> to vector<8x256xf32>
    %94 = vector.shape_cast %91 : vector<8x256xf32> to vector<1x8x256xf32>
    tpu.vector_store %arg7[%c0_73, %c0_74, %c0_75], %94 {strides = array<i32>} : memref<1x8x256xf32, #tpu.memory_space<vmem>>, vector<1x8x256xf32>,
    return
  }
  func.func @transform_0(%arg0: i32) -> (i32, i32, i32) {
    %c0_i32 = arith.constant 0 : i32
    %c0_i32_0 = arith.constant 0 : i32
    %c0_i32_1 = arith.constant 0 : i32
    return %arg0, %c0_i32, %c0_i32_0 : i32, i32, i32
  }
  func.func @transform_1(%arg0: i32) -> (i32, i32) {
    %c0_i32 = arith.constant 0 : i32
    %c0_i32_0 = arith.constant 0 : i32
    %c0_i32_1 = arith.constant 0 : i32
    return %c0_i32, %c0_i32_0 : i32, i32
  }
  func.func @transform_2(%arg0: i32) -> (i32, i32) {
    %c0_i32 = arith.constant 0 : i32
    %c0_i32_0 = arith.constant 0 : i32
    %c0_i32_1 = arith.constant 0 : i32
    return %c0_i32, %c0_i32_0 : i32, i32
  }
  func.func @transform_3(%arg0: i32) -> (i32, i32) {
    %c0_i32 = arith.constant 0 : i32
    %c0_i32_0 = arith.constant 0 : i32
    %c0_i32_1 = arith.constant 0 : i32
    return %c0_i32, %c0_i32_0 : i32, i32
  }
  func.func @transform_4(%arg0: i32) -> (i32, i32) {
    %c0_i32 = arith.constant 0 : i32
    %c0_i32_0 = arith.constant 0 : i32
    %c0_i32_1 = arith.constant 0 : i32
    return %c0_i32, %c0_i32_0 : i32, i32
  }
  func.func @transform_5(%arg0: i32) -> (i32, i32) {
    %c0_i32 = arith.constant 0 : i32
    %c0_i32_0 = arith.constant 0 : i32
    %c0_i32_1 = arith.constant 0 : i32
    return %c0_i32, %c0_i32_0 : i32, i32
  }
  func.func @transform_6(%arg0: i32) -> (i32, i32, i32) {
    %c0_i32 = arith.constant 0 : i32
    %c0_i32_0 = arith.constant 0 : i32
    %c0_i32_1 = arith.constant 0 : i32
    return %arg0, %c0_i32, %c0_i32_0 : i32, i32, i32
  }
}

</mosaic_0001>

<llo_original>
// kernel: tpu_custom_call.1
$region0: #{tpu_custom_call.1}
  #allocation0 [shape = 'u32[]', space=smem, size = 0x4, offset = 0x4, fixed_abs, tag = 'smem constant byte address 0x4 - core index']
  #allocation1 [shape = 'u32[144,128]{1,0:T(1,128)}', space=vmem, size = 0x12000, scoped, tag = 'internal scratch']
  #allocation2 [shape = 'f32[2,8,512]{2,1,0:T(8,128)}', space=vmem, size = 0x8000, scoped, tag = 'scratch operand']
  %s0 = inlined_call_operand.hbm [shape: f32[2,8,256], index: 0, kind: input, shape index: {}]
  %s1 = inlined_call_operand.vmem [shape: bf16[8,72], index: 1, kind: input, shape index: {}]
  %s2 = inlined_call_operand.vmem [shape: bf16[8,72], index: 2, kind: input, shape index: {}]
  %s3 = inlined_call_operand.vmem [shape: f32[8,1], index: 3, kind: input, shape index: {}]
  %s4 = inlined_call_operand.vmem [shape: f32[8,1], index: 4, kind: input, shape index: {}]
  %s5 = inlined_call_operand.vmem [shape: f32[2,256], index: 5, kind: input, shape index: {}]
  %s6 = inlined_call_operand.hbm [shape: f32[2,8,256], index: 6, kind: output, shape index: {}]
  %s7 = sld [smem:[#allocation0]]
  $region61: #{tpu_custom_call.1} parent=0
    _
  %s9 = ssub.s32 1, %s7
  %s10 = scalar_select 0, %s9, %s7
  $region1: #{tpu_custom_call.1} parent=0
    #allocation3 [shape = 'u8[16384]{0}', space=vmem, size = 0x4000, scoped, tag = 'input window, operand 0']
    #allocation4 [shape = 's32[2]{0}', space=sflag, size = 0x8, scoped, tag = 'scoped memory for tpu_custom_call.1']
    #allocation5 [shape = 's32[2]{0}', space=sflag, size = 0x8, scoped, tag = 'scoped memory for tpu_custom_call.1']
    #allocation6 [shape = 'u8[16384]{0}', space=vmem, size = 0x4000, scoped, tag = 'output window, operand 0']
    %11 = vsyncpa [#allocation4], 0
    %s12 = scalar_lea.sflag [#allocation4], 1
    %13 = vsyncpa %s12, 0
    %14 = vsyncpa [#allocation5], 0
    %s15 = scalar_lea.sflag [#allocation5], 1
    %16 = vsyncpa %s15, 0
    loop: start=0, step=1, limit=4
    $region2: #{tpu_custom_call.1} parent=1 // loop_pre_header
      _
    $region3: #{tpu_custom_call.1} parent=1 // loop_header
      %s18 = sphi 0, %s22
      %p19 = scmp.ge.s32.totalorder %s18, 4
      %s28 = sphi 0, %s30
      %s31 = sphi 0, %s28
      %s32 = sphi 0, %s31
      %s48 = sphi 0, %s32
      %s52 = sphi 0, %s52
      %s54 = sphi 0, %s52
      %s55 = sphi 0, %s54
      %s69 = sphi 0, %s55
      %s73 = sphi 0, %s73
      %s75 = sphi 0, %s73
      %s76 = sphi 0, %s75
      %s90 = sphi 0, %s76
      %s94 = sphi 0, %s94
      %s96 = sphi 0, %s94
      %s97 = sphi 0, %s96
      %s111 = sphi 0, %s97
      %s115 = sphi 0, %s115
      %s117 = sphi 0, %s115
      %s118 = sphi 0, %s117
      %s132 = sphi 0, %s118
      %s136 = sphi 0, %s136
      %s138 = sphi 0, %s136
      %s139 = sphi 0, %s138
      %s153 = sphi 0, %s139
      %s159 = sphi 0, %s161
      %s162 = sphi 0, %s159
      %s163 = sphi 0, %s162
      %s179 = sphi 0, %s163
    $region4: #{tpu_custom_call.1} parent=1 // loop_header_branch
      %21 = sbr.rel (%p19) target = $region8
    $region5: #{tpu_custom_call.1} parent=1 // loop_body
      %s23 = ssub.s32 %s18, 1
      %s24 = ssub.s32 %s18, 2
      %s25 = sadd.s32 %s18, 1
      %s26 = ssub.s32 %s18, %s25
      %p27 = scmp.eq.s32.totalorder %s26, 0
      %s29 = sadd.s32 %s28, 1
      %s30 = scalar_select %p27, %s28, %s29
      %p33 = pneg %p27
      %p34 = scmp.eq.s32.totalorder %s18, 1
      %p35 = por %p33, %p34
      %p36 = scmp.ne.s32.totalorder %s28, %s31
      %p37 = scmp.eq.s32.totalorder %s18, 0
      %p38 = por %p36, %p37
      %p39 = scmp.ne.s32.totalorder %s28, %s31
      %p40 = scmp.eq.s32.totalorder %s23, 1
      %p41 = por %p39, %p40
      %p42 = scmp.ne.s32.totalorder %s31, %s32
      %p43 = scmp.eq.s32.totalorder %s23, 0
      %p44 = por %p42, %p43
      %p45 = scmp.ne.s32.totalorder %s31, %s32
      %p46 = scmp.eq.s32.totalorder %s24, 1
      %p47 = por %p45, %p46
      %p49 = scmp.ne.s32.totalorder %s32, %s48
      %p50 = scmp.eq.s32.totalorder %s24, 0
      %p51 = por %p49, %p50
      %s53 = sadd.s32 %s52, 1
      %p56 = scmp.eq.s32.totalorder %s18, 1
      %p57 = scmp.ne.s32.totalorder %s52, %s54
      %p58 = scmp.eq.s32.totalorder %s18, 0
      %p59 = por %p57, %p58
      %p60 = scmp.ne.s32.totalorder %s52, %s54
      %p61 = scmp.eq.s32.totalorder %s23, 1
      %p62 = por %p60, %p61
      %p63 = scmp.ne.s32.totalorder %s54, %s55
      %p64 = scmp.eq.s32.totalorder %s23, 0
      %p65 = por %p63, %p64
      %p66 = scmp.ne.s32.totalorder %s54, %s55
      %p67 = scmp.eq.s32.totalorder %s24, 1
      %p68 = por %p66, %p67
      %p70 = scmp.ne.s32.totalorder %s55, %s69
      %p71 = scmp.eq.s32.totalorder %s24, 0
      %p72 = por %p70, %p71
      %s74 = sadd.s32 %s73, 1
      %p77 = scmp.eq.s32.totalorder %s18, 1
      %p78 = scmp.ne.s32.totalorder %s73, %s75
      %p79 = scmp.eq.s32.totalorder %s18, 0
      %p80 = por %p78, %p79
      %p81 = scmp.ne.s32.totalorder %s73, %s75
      %p82 = scmp.eq.s32.totalorder %s23, 1
      %p83 = por %p81, %p82
      %p84 = scmp.ne.s32.totalorder %s75, %s76
      %p85 = scmp.eq.s32.totalorder %s23, 0
      %p86 = por %p84, %p85
      %p87 = scmp.ne.s32.totalorder %s75, %s76
      %p88 = scmp.eq.s32.totalorder %s24, 1
      %p89 = por %p87, %p88
      %p91 = scmp.ne.s32.totalorder %s76, %s90
      %p92 = scmp.eq.s32.totalorder %s24, 0
      %p93 = por %p91, %p92
      %s95 = sadd.s32 %s94, 1
      %p98 = scmp.eq.s32.totalorder %s18, 1
      %p99 = scmp.ne.s32.totalorder %s94, %s96
      %p100 = scmp.eq.s32.totalorder %s18, 0
      %p101 = por %p99, %p100
      %p102 = scmp.ne.s32.totalorder %s94, %s96
      %p103 = scmp.eq.s32.totalorder %s23, 1
      %p104 = por %p102, %p103
      %p105 = scmp.ne.s32.totalorder %s96, %s97
      %p106 = scmp.eq.s32.totalorder %s23, 0
      %p107 = por %p105, %p106
      %p108 = scmp.ne.s32.totalorder %s96, %s97
      %p109 = scmp.eq.s32.totalorder %s24, 1
      %p110 = por %p108, %p109
      %p112 = scmp.ne.s32.totalorder %s97, %s111
      %p113 = scmp.eq.s32.totalorder %s24, 0
      %p114 = por %p112, %p113
      %s116 = sadd.s32 %s115, 1
      %p119 = scmp.eq.s32.totalorder %s18, 1
      %p120 = scmp.ne.s32.totalorder %s115, %s117
      %p121 = scmp.eq.s32.totalorder %s18, 0
      %p122 = por %p120, %p121
      %p123 = scmp.ne.s32.totalorder %s115, %s117
      %p124 = scmp.eq.s32.totalorder %s23, 1
      %p125 = por %p123, %p124
      %p126 = scmp.ne.s32.totalorder %s117, %s118
      %p127 = scmp.eq.s32.totalorder %s23, 0
      %p128 = por %p126, %p127
      %p129 = scmp.ne.s32.totalorder %s117, %s118
      %p130 = scmp.eq.s32.totalorder %s24, 1
      %p131 = por %p129, %p130
      %p133 = scmp.ne.s32.totalorder %s118, %s132
      %p134 = scmp.eq.s32.totalorder %s24, 0
      %p135 = por %p133, %p134
      %s137 = sadd.s32 %s136, 1
      %p140 = scmp.eq.s32.totalorder %s18, 1
      %p141 = scmp.ne.s32.totalorder %s136, %s138
      %p142 = scmp.eq.s32.totalorder %s18, 0
      %p143 = por %p141, %p142
      %p144 = scmp.ne.s32.totalorder %s136, %s138
      %p145 = scmp.eq.s32.totalorder %s23, 1
      %p146 = por %p144, %p145
      %p147 = scmp.ne.s32.totalorder %s138, %s139
      %p148 = scmp.eq.s32.totalorder %s23, 0
      %p149 = por %p147, %p148
      %p150 = scmp.ne.s32.totalorder %s138, %s139
      %p151 = scmp.eq.s32.totalorder %s24, 1
      %p152 = por %p150, %p151
      %p154 = scmp.ne.s32.totalorder %s139, %s153
      %p155 = scmp.eq.s32.totalorder %s24, 0
      %p156 = por %p154, %p155
      %s157 = ssub.s32 %s18, %s25
      %p158 = scmp.eq.s32.totalorder %s157, 0
      %s160 = sadd.s32 %s159, 1
      %s161 = scalar_select %p158, %s159, %s160
      %p164 = pneg %p158
      %p165 = scmp.eq.s32.totalorder %s18, 1
      %p166 = por %p164, %p165
      %p167 = scmp.ne.s32.totalorder %s159, %s162
      %p168 = scmp.eq.s32.totalorder %s18, 0
      %p169 = por %p167, %p168
      %p170 = scmp.ne.s32.totalorder %s159, %s162
      %p171 = scmp.eq.s32.totalorder %s23, 1
      %p172 = por %p170, %p171
      %p173 = scmp.ne.s32.totalorder %s162, %s163
      %p174 = scmp.eq.s32.totalorder %s23, 0
      %p175 = por %p173, %p174
      %p176 = scmp.ne.s32.totalorder %s162, %s163
      %p177 = scmp.eq.s32.totalorder %s24, 1
      %p178 = por %p176, %p177
      %p180 = scmp.ne.s32.totalorder %s163, %s179
      %p181 = scmp.eq.s32.totalorder %s24, 0
      %p182 = por %p180, %p181
      %p183 = scmp.le.s32.totalorder 1, %s18
      %p184 = scmp.lt.s32.totalorder %s18, 3
      %p185 = pnand %p183, %p184
      %p186 = pneg %p185
      // Predicated region
      $region9: #{tpu_custom_call.1} parent=5 // pred_check
        _
      $region10: #{tpu_custom_call.1} parent=5 // pred_check_branch
        %188 = sbr.rel (%p185) target = $region12
      $region11: #{tpu_custom_call.1} parent=5 // pred_region
        %s189 = ssub.s32 %s18, 1
        // Predicated region
        $region13: #{tpu_custom_call.1} parent=11 // pred_check
          %p190 = pneg %p65
        $region14: #{tpu_custom_call.1} parent=11 // pred_check_branch
          %192 = sbr.rel (%p190) target = $region16
        $region15: #{tpu_custom_call.1} parent=11 // pred_region
          _
        $region16: #{tpu_custom_call.1} parent=11 // pred_fallthru
          _
        // Predicated region
        $region17: #{tpu_custom_call.1} parent=11 // pred_check
          %p193 = pneg %p86
        $region18: #{tpu_custom_call.1} parent=11 // pred_check_branch
          %195 = sbr.rel (%p193) target = $region20
        $region19: #{tpu_custom_call.1} parent=11 // pred_region
          _
        $region20: #{tpu_custom_call.1} parent=11 // pred_fallthru
          _
        // Predicated region
        $region21: #{tpu_custom_call.1} parent=11 // pred_check
          %p196 = pneg %p107
        $region22: #{tpu_custom_call.1} parent=11 // pred_check_branch
          %198 = sbr.rel (%p196) target = $region24
        $region23: #{tpu_custom_call.1} parent=11 // pred_region
          _
        $region24: #{tpu_custom_call.1} parent=11 // pred_fallthru
          _
        // Predicated region
        $region25: #{tpu_custom_call.1} parent=11 // pred_check
          %p199 = pneg %p128
        $region26: #{tpu_custom_call.1} parent=11 // pred_check_branch
          %201 = sbr.rel (%p199) target = $region28
        $region27: #{tpu_custom_call.1} parent=11 // pred_region
          _
        $region28: #{tpu_custom_call.1} parent=11 // pred_fallthru
          _
        // Predicated region
        $region29: #{tpu_custom_call.1} parent=11 // pred_check
          %p202 = pneg %p149
        $region30: #{tpu_custom_call.1} parent=11 // pred_check_branch
          %204 = sbr.rel (%p202) target = $region32
        $region31: #{tpu_custom_call.1} parent=11 // pred_region
          _
        $region32: #{tpu_custom_call.1} parent=11 // pred_fallthru
          _
      $region12: #{tpu_custom_call.1} parent=5 // pred_fallthru
        _
      %p205 = scmp.lt.s32.totalorder %s18, 2
      // Predicated region
      $region33: #{tpu_custom_call.1} parent=5 // pred_check
        %p206 = pneg %p205
      $region34: #{tpu_custom_call.1} parent=5 // pred_check_branch
        %208 = sbr.rel (%p206) target = $region36
      $region35: #{tpu_custom_call.1} parent=5 // pred_region
        // Predicated region
        $region37: #{tpu_custom_call.1} parent=35 // pred_check
          %p209 = pneg %p38
        $region38: #{tpu_custom_call.1} parent=35 // pred_check_branch
          %211 = sbr.rel (%p209) target = $region40
        $region39: #{tpu_custom_call.1} parent=35 // pred_region
          %s212 = sand.u32 %s28, 1
          %s213 = scalar_lea.sflag [#allocation4], %s212
          %s214 = sand.u32 %s28, 1
          %s215 = smul.addr %s214, 16
          %s216 = scalar_lea.vmem [#allocation3], %s215
          %s218 = ssub.s32 256, 256
          %219 = vsyncadd %s213, %s218
          %s220 = smul.addr %s18, 2
          %s221 = smul.addr %s220, 128
          %s222 = scalar_lea.hbm %s0, %s221
          %s224 = sshll.u32 %s216, 4
          %s225 = int_to_ptr.vmem [resolvable:$true] %s224
          %227 = dma.hbm_to_vmem [thread:$0]  %s222, 256, %s225, %s213
        $region40: #{tpu_custom_call.1} parent=35 // pred_fallthru
          _
      $region36: #{tpu_custom_call.1} parent=5 // pred_fallthru
        _
      %p228 = scmp.le.s32.totalorder 1, %s18
      %p229 = scmp.lt.s32.totalorder %s18, 3
      %p230 = pnand %p228, %p229
      %p231 = pneg %p230
      // Predicated region
      $region41: #{tpu_custom_call.1} parent=5 // pred_check
        _
      $region42: #{tpu_custom_call.1} parent=5 // pred_check_branch
        %233 = sbr.rel (%p230) target = $region44
      $region43: #{tpu_custom_call.1} parent=5 // pred_region
        %s234 = ssub.s32 %s18, 1
        %s235 = sand.u32 %s31, 1
        %s236 = scalar_lea.sflag [#allocation4], %s235
        %s237 = sand.u32 %s31, 1
        %s238 = smul.addr %s237, 16
        %s239 = scalar_lea.vmem [#allocation3], %s238
        // Predicated region
        $region45: #{tpu_custom_call.1} parent=43 // pred_check
          %p240 = pneg %p44
        $region46: #{tpu_custom_call.1} parent=43 // pred_check_branch
          %242 = sbr.rel (%p240) target = $region48
        $region47: #{tpu_custom_call.1} parent=43 // pred_region
          %243 = dma.done %s236, 256
        $region48: #{tpu_custom_call.1} parent=43 // pred_fallthru
          _
        %s244 = sand.u32 %s31, 1
        %s245 = scalar_lea.sflag [#allocation4], %s244
        %s246 = sand.u32 %s31, 1
        %s247 = smul.addr %s246, 16
        %s248 = scalar_lea.vmem [#allocation3], %s247
        %p249 = pneg %p44
        %p250 = pneg %p41
        %p251 = pneg %p65
        %p252 = pneg %p62
        %p253 = pneg %p86
        %p254 = pneg %p83
        %p255 = pneg %p107
        %p256 = pneg %p104
        %p257 = pneg %p128
        %p258 = pneg %p125
        %p259 = pneg %p149
        %p260 = pneg %p146
        %p261 = pneg %p175
        %p262 = pneg %p172
        %s263 = sand.u32 %s162, 1
        %s264 = scalar_lea.sflag [#allocation5], %s263
        %s265 = sand.u32 %s162, 1
        %s266 = smul.addr %s265, 16
        %s267 = scalar_lea.vmem [#allocation6], %s266
        %269 = vst [vmem:[#allocation2] sm:$0xff] 0.0
        %270 = vst [vmem:[#allocation2 + $0x20] sm:$0xff] 0.0
        %271 = vst [vmem:[#allocation2 + $0x18] sm:$0xff] 0.0
        %272 = vst [vmem:[#allocation2 + $0x38] sm:$0xff] 0.0
        %v273 = vld [vmem:[%s5] ss:$2 sm:$0x3]
        %s274 = scalar_lea.vmem %s5, 1
        %v275 = vld [vmem:[%s274] ss:$2 sm:$0x3]
        %v276 = vld [vmem:[%s239] sm:$0xff]
        %v277 = vld [vmem:[%s239 + $0x8] sm:$0xff]
        %278 = vst [vmem:[#allocation2 + $0x8] sm:$0xff] %v276
        %279 = vst [vmem:[#allocation2 + $0x10] sm:$0xff] %v277
        %v280 = vld [vmem:[%s1] sm:$0xf]
        %v281 = vld [vmem:[#allocation2] sm:$0xff]
        %v282 = vld [vmem:[#allocation2 + $0x8] sm:$0xff]
        %v283 = vld [vmem:[#allocation2 + $0x10] sm:$0xff]
        %v285 = vlaneseq
        %v286 = vshrl.u32 %v285, 7
        %v287 = vsub.s32 0, %v286
        %v288 = vrot.slane %v273, %v287
        %v289 = vlaneseq
        %v290 = vshrl.u32 %v289, 7
        %v291 = vsub.s32 1, %v290
        %v292 = vrot.slane %v273, %v291
        %293 = vrot.lane.b32.xlu0 %v288, 111
        %v294 = vpop.permute.xlu0 %293
        %295 = vrot.lane.b32.xlu0 %v292, 111
        %v296 = vpop.permute.xlu0 %295
        %vm297 = vcmask 908288
        %v298 = vsel %vm297, %v294, %v296
        %v302 = vmul.f32 %v281, %v294
        %v303 = vmul.f32 %v282, %v298
        %v304 = vmul.f32 %v283, %v296
        %v306 = vlaneseq
        %v307 = vshrl.u32 %v306, 7
        %v308 = vsub.s32 0, %v307
        %v309 = vrot.slane %v275, %v308
        %v310 = vlaneseq
        %v311 = vshrl.u32 %v310, 7
        %v312 = vsub.s32 1, %v311
        %v313 = vrot.slane %v275, %v312
        %314 = vrot.lane.b32.xlu0 %v309, 113
        %v315 = vpop.permute.xlu0 %314
        %316 = vrot.lane.b32.xlu0 %v313, 113
        %v317 = vpop.permute.xlu0 %316
        %vm318 = vcmask 924672
        %v319 = vsel %vm318, %v315, %v317
        %v323 = vmul.f32 %v281, %v315
        %v324 = vmul.f32 %v282, %v319
        %v325 = vmul.f32 %v283, %v317
        %326 = vrot.lane.b32.xlu0 %v288, 127
        %v327 = vpop.permute.xlu0 %326
        %328 = vrot.lane.b32.xlu0 %v292, 127
        %v329 = vpop.permute.xlu0 %328
        %vm330 = vcmask 1039360
        %v331 = vsel %vm330, %v327, %v329
        %v335 = vmul.f32 %v281, %v327
        %v336 = vmul.f32 %v282, %v331
        %v337 = vmul.f32 %v283, %v329
        %v338 = vld [vmem:[#allocation2 + $0x18] sm:$0xff]
        %339 = vrot.lane.b32.xlu0 %v309, 1
        %v340 = vpop.permute.xlu0 %339
        %341 = vrot.lane.b32.xlu0 %v313, 1
        %v342 = vpop.permute.xlu0 %341
        %vm343 = vcmask 7168
        %v344 = vsel %vm343, %v340, %v342
        %v348 = vmul.f32 %v282, %v340
        %v349 = vmul.f32 %v283, %v344
        %v350 = vmul.f32 %v338, %v342
        %351 = vrot.lane.b32.xlu0 %v288, 15
        %v352 = vpop.permute.xlu0 %351
        %353 = vrot.lane.b32.xlu0 %v292, 15
        %v354 = vpop.permute.xlu0 %353
        %vm355 = vcmask 121856
        %v356 = vsel %vm355, %v352, %v354
        %v360 = vmul.f32 %v282, %v352
        %v361 = vmul.f32 %v283, %v356
        %v362 = vmul.f32 %v338, %v354
        %363 = vrot.lane.b32.xlu0 %v309, 17
        %v364 = vpop.permute.xlu0 %363
        %365 = vrot.lane.b32.xlu0 %v313, 17
        %v366 = vpop.permute.xlu0 %365
        %vm367 = vcmask 138240
        %v368 = vsel %vm367, %v364, %v366
        %v372 = vmul.f32 %v282, %v364
        %v373 = vmul.f32 %v283, %v368
        %v374 = vmul.f32 %v338, %v366
        %378 = vrot.lane.b32.xlu0 %v281, 127
        %v379 = vpop.permute.xlu0 %378
        %380 = vrot.lane.b32.xlu0 %v282, 127
        %v381 = vpop.permute.xlu0 %380
        %382 = vrot.lane.b32.xlu0 %v283, 127
        %v383 = vpop.permute.xlu0 %382
        %v384 = vsel %vm330, %v379, %v381
        %v385 = vsel %vm330, %v381, %v383
        %392 = vrot.lane.b32.xlu0 %v323, 126
        %v393 = vpop.permute.xlu0 %392
        %394 = vrot.lane.b32.xlu0 %v324, 126
        %v395 = vpop.permute.xlu0 %394
        %396 = vrot.lane.b32.xlu0 %v325, 126
        %v397 = vpop.permute.xlu0 %396
        %vm398 = vcmask 1031168
        %v399 = vsel %vm398, %v393, %v395
        %v400 = vsel %vm398, %v395, %v397
        %407 = vrot.lane.b32.xlu0 %v335, 112
        %v408 = vpop.permute.xlu0 %407
        %409 = vrot.lane.b32.xlu0 %v336, 112
        %v410 = vpop.permute.xlu0 %409
        %411 = vrot.lane.b32.xlu0 %v337, 112
        %v412 = vpop.permute.xlu0 %411
        %vm413 = vcmask 916480
        %v414 = vsel %vm413, %v408, %v410
        %v415 = vsel %vm413, %v410, %v412
        %419 = vrot.lane.b32.xlu0 %v282, 111
        %v420 = vpop.permute.xlu0 %419
        %421 = vrot.lane.b32.xlu0 %v283, 111
        %v422 = vpop.permute.xlu0 %421
        %v423 = vsel %vm297, %v420, %v422
        %430 = vrot.lane.b32.xlu0 %v348, 110
        %v431 = vpop.permute.xlu0 %430
        %432 = vrot.lane.b32.xlu0 %v349, 110
        %v433 = vpop.permute.xlu0 %432
        %434 = vrot.lane.b32.xlu0 %v350, 110
        %v435 = vpop.permute.xlu0 %434
        %vm436 = vcmask 900096
        %v437 = vsel %vm436, %v431, %v433
        %v438 = vsel %vm436, %v433, %v435
        %445 = vrot.lane.b32.xlu0 %v360, 96
        %v446 = vpop.permute.xlu0 %445
        %447 = vrot.lane.b32.xlu0 %v361, 96
        %v448 = vpop.permute.xlu0 %447
        %449 = vrot.lane.b32.xlu0 %v362, 96
        %v450 = vpop.permute.xlu0 %449
        %vm451 = vcmask 785408
        %v452 = vsel %vm451, %v446, %v448
        %v453 = vsel %vm451, %v448, %v450
        %458 = vrot.lane.b32.xlu0 %v282, 95
        %v459 = vpop.permute.xlu0 %458
        %460 = vrot.lane.b32.xlu0 %v283, 95
        %v461 = vpop.permute.xlu0 %460
        %462 = vrot.lane.b32.xlu0 %v338, 95
        %v463 = vpop.permute.xlu0 %462
        %vm464 = vcmask 777216
        %v465 = vsel %vm464, %v459, %v461
        %v466 = vsel %vm464, %v461, %v463
        %473 = vrot.lane.b32.xlu0 %v372, 94
        %v474 = vpop.permute.xlu0 %473
        %475 = vrot.lane.b32.xlu0 %v373, 94
        %v476 = vpop.permute.xlu0 %475
        %477 = vrot.lane.b32.xlu0 %v374, 94
        %v478 = vpop.permute.xlu0 %477
        %vm479 = vcmask 769024
        %v480 = vsel %vm479, %v474, %v476
        %v481 = vsel %vm479, %v476, %v478
        %v485 = vpack.c.bf16 %v384, %v302
        %v486 = vpack.c.bf16 %v385, %v303
        %v487 = vpack.c.bf16 %v383, %v304
        %v488 = vpack.c.bf16 %v414, %v399
        %v489 = vpack.c.bf16 %v415, %v400
        %v490 = vpack.c.bf16 %v412, %v397
        %v491 = vpack.c.bf16 %v431, %v420
        %v492 = vpack.c.bf16 %v437, %v423
        %v493 = vpack.c.bf16 %v438, %v422
        %v494 = vpack.c.bf16 %v459, %v446
        %v495 = vpack.c.bf16 %v465, %v452
        %v496 = vpack.c.bf16 %v466, %v453
        %v497 = vpack.c.bf16 %v474, %v474
        %v498 = vpack.c.bf16 %v480, %v480
        %v499 = vpack.c.bf16 %v481, %v481
        %v500 = vld [vmem:[%s3] sm:$0xff]
        %502 = vset.pattern.permute.xlu0 0
        %503 = vperm.xlu0 %502, %v500
        %v504 = vpop.permute.xlu0 %503
        %521 = vrot.lane.b32.xlu0 %v485, 17
        %v522 = vpop.permute.xlu0 %521
        %523 = vrot.lane.b32.xlu0 %v486, 17
        %v524 = vpop.permute.xlu0 %523
        %525 = vrot.lane.b32.xlu0 %v487, 17
        %v526 = vpop.permute.xlu0 %525
        %527 = vrot.lane.b32.xlu0 %v488, 17
        %v528 = vpop.permute.xlu0 %527
        %529 = vrot.lane.b32.xlu0 %v489, 17
        %v530 = vpop.permute.xlu0 %529
        %531 = vrot.lane.b32.xlu0 %v490, 17
        %v532 = vpop.permute.xlu0 %531
        %533 = vrot.lane.b32.xlu0 %v491, 17
        %v534 = vpop.permute.xlu0 %533
        %535 = vrot.lane.b32.xlu0 %v492, 17
        %v536 = vpop.permute.xlu0 %535
        %537 = vrot.lane.b32.xlu0 %v493, 17
        %v538 = vpop.permute.xlu0 %537
        %539 = vrot.lane.b32.xlu0 %v494, 17
        %v540 = vpop.permute.xlu0 %539
        %541 = vrot.lane.b32.xlu0 %v495, 17
        %v542 = vpop.permute.xlu0 %541
        %543 = vrot.lane.b32.xlu0 %v496, 17
        %v544 = vpop.permute.xlu0 %543
        %545 = vrot.lane.b32.xlu0 %v497, 17
        %v546 = vpop.permute.xlu0 %545
        %547 = vrot.lane.b32.xlu0 %v498, 17
        %v548 = vpop.permute.xlu0 %547
        %549 = vrot.lane.b32.xlu0 %v499, 17
        %v550 = vpop.permute.xlu0 %549
        %vm551 = vcmask 138240
        %v552 = vsel %vm551, %v522, %v524
        %v553 = vsel %vm551, %v524, %v526
        %v554 = vsel %vm551, %v528, %v530
        %v555 = vsel %vm551, %v530, %v532
        %v556 = vsel %vm551, %v534, %v536
        %v557 = vsel %vm551, %v536, %v538
        %v558 = vsel %vm551, %v540, %v542
        %v559 = vsel %vm551, %v542, %v544
        %v560 = vsel %vm551, %v546, %v548
        %v561 = vsel %vm551, %v548, %v550
        %vm570 = vcmask 588800
        %v572 = vsel %vm570, %v280, 0
        %vm574 = vcmask 1043456
        %v576 = vsel %vm574, %v560, 0
        %v579 = vsel %vm574, %v561, 0
        %581 = vmatprep.subr.bf16.mxu0 %v553
        %582 = vmatpush1.bf16.msra.mxu0 %v552
        %583 = vmatprep.subr.bf16.mxu0 %v555
        %584 = vmatpush1.bf16.msra.mxu0 %v554
        %585 = vmatprep.subr.bf16.mxu0 %v557
        %586 = vmatpush1.bf16.msra.mxu0 %v556
        %587 = vmatprep.subr.bf16.mxu0 %v559
        %588 = vmatpush1.bf16.msra.mxu0 %v558
        %589 = vmatprep.subr.bf16.mxu0 %v579
        %590 = vmatpush1.bf16.msra.mxu0 %v576
        %591 = vmatprep.subr.bf16.mxu0 0
        %592 = vmatpush1.bf16.msra.mxu0 0
        %593 = vmatprep.subr.bf16.mxu0 0
        %594 = vmatpush1.bf16.msra.mxu0 0
        %595 = vmatprep.subr.bf16.mxu0 0
        %596 = vmatpush1.bf16.msra.mxu0 0
        %597 = vmatprep.subr.bf16.mxu0 0
        %598 = vmatpush1.bf16.msra.mxu0 0
        %599 = vmatprep.subr.bf16.mxu0 0
        %600 = vmatpush1.bf16.msra.mxu0 0
        %601 = vmatprep.subr.bf16.mxu0 0
        %602 = vmatpush1.bf16.msra.mxu0 0
        %603 = vmatprep.subr.bf16.mxu0 0
        %604 = vmatpush1.bf16.msra.mxu0 0
        %605 = vmatprep.subr.bf16.mxu0 0
        %606 = vmatpush1.bf16.msra.mxu0 0
        %607 = vmatprep.subr.bf16.mxu0 0
        %608 = vmatpush1.bf16.msra.mxu0 0
        %609 = vmatprep.subr.bf16.mxu0 0
        %610 = vmatpush1.bf16.msra.mxu0 0
        %611 = vmatprep.subr.bf16.mxu0 0
        %612 = vmatpush1.bf16.msra.mxu0 0
        %613 = vmatprep.mubr.bf16.mxu0 0
        %614 = vmatmul.mubr.bf16.gmra.mrb[0].mxu0 %v572
        %v615 = vpop.f32.mrb[0].mxu0
        %v616 = vadd.f32 %v504, %v615
        %v617 = vpop.f32.mrb[0].mxu0
        %v618 = vadd.f32 %v504, %v617
        %v619 = vpop.f32.mrb[0].mxu0
        %v620 = vpop.f32.mrb[0].mxu0
        %621 = vdwg.mxu0
        %v622 = vmax.f32 %v616, 0.0
        %v623 = vmax.f32 %v618, 0.0
        %s624 = scalar_lea.vmem [#allocation2], 32
        %625 = vst [vmem:[%s624 + $0x8] sm:$0xff] %v622
        %626 = vst [vmem:[%s624 + $0x10] sm:$0xff] %v623
        %v627 = vld [vmem:[%s2] sm:$0xf]
        %v628 = vld [vmem:[%s624] sm:$0xff]
        %v629 = vld [vmem:[%s624 + $0x8] sm:$0xff]
        %v630 = vld [vmem:[%s624 + $0x10] sm:$0xff]
        %v631 = vmul.f32 %v628, %v294
        %v632 = vmul.f32 %v629, %v298
        %v633 = vmul.f32 %v630, %v296
        %v634 = vmul.f32 %v628, %v315
        %v635 = vmul.f32 %v629, %v319
        %v636 = vmul.f32 %v630, %v317
        %v637 = vmul.f32 %v628, %v327
        %v638 = vmul.f32 %v629, %v331
        %v639 = vmul.f32 %v630, %v329
        %v640 = vld [vmem:[%s624 + $0x18] sm:$0xff]
        %v641 = vmul.f32 %v629, %v340
        %v642 = vmul.f32 %v630, %v344
        %v643 = vmul.f32 %v640, %v342
        %v644 = vmul.f32 %v629, %v352
        %v645 = vmul.f32 %v630, %v356
        %v646 = vmul.f32 %v640, %v354
        %v647 = vmul.f32 %v629, %v364
        %v648 = vmul.f32 %v630, %v368
        %v649 = vmul.f32 %v640, %v366
        %653 = vrot.lane.b32.xlu0 %v628, 127
        %v654 = vpop.permute.xlu0 %653
        %655 = vrot.lane.b32.xlu0 %v629, 127
        %v656 = vpop.permute.xlu0 %655
        %657 = vrot.lane.b32.xlu0 %v630, 127
        %v658 = vpop.permute.xlu0 %657
        %v659 = vsel %vm330, %v654, %v656
        %v660 = vsel %vm330, %v656, %v658
        %667 = vrot.lane.b32.xlu0 %v634, 126
        %v668 = vpop.permute.xlu0 %667
        %669 = vrot.lane.b32.xlu0 %v635, 126
        %v670 = vpop.permute.xlu0 %669
        %671 = vrot.lane.b32.xlu0 %v636, 126
        %v672 = vpop.permute.xlu0 %671
        %v673 = vsel %vm398, %v668, %v670
        %v674 = vsel %vm398, %v670, %v672
        %681 = vrot.lane.b32.xlu0 %v637, 112
        %v682 = vpop.permute.xlu0 %681
        %683 = vrot.lane.b32.xlu0 %v638, 112
        %v684 = vpop.permute.xlu0 %683
        %685 = vrot.lane.b32.xlu0 %v639, 112
        %v686 = vpop.permute.xlu0 %685
        %v687 = vsel %vm413, %v682, %v684
        %v688 = vsel %vm413, %v684, %v686
        %692 = vrot.lane.b32.xlu0 %v629, 111
        %v693 = vpop.permute.xlu0 %692
        %694 = vrot.lane.b32.xlu0 %v630, 111
        %v695 = vpop.permute.xlu0 %694
        %v696 = vsel %vm297, %v693, %v695
        %703 = vrot.lane.b32.xlu0 %v641, 110
        %v704 = vpop.permute.xlu0 %703
        %705 = vrot.lane.b32.xlu0 %v642, 110
        %v706 = vpop.permute.xlu0 %705
        %707 = vrot.lane.b32.xlu0 %v643, 110
        %v708 = vpop.permute.xlu0 %707
        %v709 = vsel %vm436, %v704, %v706
        %v710 = vsel %vm436, %v706, %v708
        %717 = vrot.lane.b32.xlu0 %v644, 96
        %v718 = vpop.permute.xlu0 %717
        %719 = vrot.lane.b32.xlu0 %v645, 96
        %v720 = vpop.permute.xlu0 %719
        %721 = vrot.lane.b32.xlu0 %v646, 96
        %v722 = vpop.permute.xlu0 %721
        %v723 = vsel %vm451, %v718, %v720
        %v724 = vsel %vm451, %v720, %v722
        %729 = vrot.lane.b32.xlu0 %v629, 95
        %v730 = vpop.permute.xlu0 %729
        %731 = vrot.lane.b32.xlu0 %v630, 95
        %v732 = vpop.permute.xlu0 %731
        %733 = vrot.lane.b32.xlu0 %v640, 95
        %v734 = vpop.permute.xlu0 %733
        %v735 = vsel %vm464, %v730, %v732
        %v736 = vsel %vm464, %v732, %v734
        %743 = vrot.lane.b32.xlu0 %v647, 94
        %v744 = vpop.permute.xlu0 %743
        %745 = vrot.lane.b32.xlu0 %v648, 94
        %v746 = vpop.permute.xlu0 %745
        %747 = vrot.lane.b32.xlu0 %v649, 94
        %v748 = vpop.permute.xlu0 %747
        %v749 = vsel %vm479, %v744, %v746
        %v750 = vsel %vm479, %v746, %v748
        %v754 = vpack.c.bf16 %v659, %v631
        %v755 = vpack.c.bf16 %v660, %v632
        %v756 = vpack.c.bf16 %v658, %v633
        %v757 = vpack.c.bf16 %v687, %v673
        %v758 = vpack.c.bf16 %v688, %v674
        %v759 = vpack.c.bf16 %v686, %v672
        %v760 = vpack.c.bf16 %v704, %v693
        %v761 = vpack.c.bf16 %v709, %v696
        %v762 = vpack.c.bf16 %v710, %v695
        %v763 = vpack.c.bf16 %v730, %v718
        %v764 = vpack.c.bf16 %v735, %v723
        %v765 = vpack.c.bf16 %v736, %v724
        %v766 = vpack.c.bf16 %v744, %v744
        %v767 = vpack.c.bf16 %v749, %v749
        %v768 = vpack.c.bf16 %v750, %v750
        %v769 = vld [vmem:[%s4] sm:$0xff]
        %771 = vset.pattern.permute.xlu0 0
        %772 = vperm.xlu0 %771, %v769
        %v773 = vpop.permute.xlu0 %772
        %790 = vrot.lane.b32.xlu0 %v754, 17
        %v791 = vpop.permute.xlu0 %790
        %792 = vrot.lane.b32.xlu0 %v755, 17
        %v793 = vpop.permute.xlu0 %792
        %794 = vrot.lane.b32.xlu0 %v756, 17
        %v795 = vpop.permute.xlu0 %794
        %796 = vrot.lane.b32.xlu0 %v757, 17
        %v797 = vpop.permute.xlu0 %796
        %798 = vrot.lane.b32.xlu0 %v758, 17
        %v799 = vpop.permute.xlu0 %798
        %800 = vrot.lane.b32.xlu0 %v759, 17
        %v801 = vpop.permute.xlu0 %800
        %802 = vrot.lane.b32.xlu0 %v760, 17
        %v803 = vpop.permute.xlu0 %802
        %804 = vrot.lane.b32.xlu0 %v761, 17
        %v805 = vpop.permute.xlu0 %804
        %806 = vrot.lane.b32.xlu0 %v762, 17
        %v807 = vpop.permute.xlu0 %806
        %808 = vrot.lane.b32.xlu0 %v763, 17
        %v809 = vpop.permute.xlu0 %808
        %810 = vrot.lane.b32.xlu0 %v764, 17
        %v811 = vpop.permute.xlu0 %810
        %812 = vrot.lane.b32.xlu0 %v765, 17
        %v813 = vpop.permute.xlu0 %812
        %814 = vrot.lane.b32.xlu0 %v766, 17
        %v815 = vpop.permute.xlu0 %814
        %816 = vrot.lane.b32.xlu0 %v767, 17
        %v817 = vpop.permute.xlu0 %816
        %818 = vrot.lane.b32.xlu0 %v768, 17
        %v819 = vpop.permute.xlu0 %818
        %v820 = vsel %vm551, %v791, %v793
        %v821 = vsel %vm551, %v793, %v795
        %v822 = vsel %vm551, %v797, %v799
        %v823 = vsel %vm551, %v799, %v801
        %v824 = vsel %vm551, %v803, %v805
        %v825 = vsel %vm551, %v805, %v807
        %v826 = vsel %vm551, %v809, %v811
        %v827 = vsel %vm551, %v811, %v813
        %v828 = vsel %vm551, %v815, %v817
        %v829 = vsel %vm551, %v817, %v819
        %v839 = vsel %vm570, %v627, 0
        %v842 = vsel %vm574, %v828, 0
        %v845 = vsel %vm574, %v829, 0
        %847 = vmatprep.subr.bf16.mxu0 %v821
        %848 = vmatpush1.bf16.msra.mxu0 %v820
        %849 = vmatprep.subr.bf16.mxu0 %v823
        %850 = vmatpush1.bf16.msra.mxu0 %v822
        %851 = vmatprep.subr.bf16.mxu0 %v825
        %852 = vmatpush1.bf16.msra.mxu0 %v824
        %853 = vmatprep.subr.bf16.mxu0 %v827
        %854 = vmatpush1.bf16.msra.mxu0 %v826
        %855 = vmatprep.subr.bf16.mxu0 %v845
        %856 = vmatpush1.bf16.msra.mxu0 %v842
        %857 = vmatprep.subr.bf16.mxu0 0
        %858 = vmatpush1.bf16.msra.mxu0 0
        %859 = vmatprep.subr.bf16.mxu0 0
        %860 = vmatpush1.bf16.msra.mxu0 0
        %861 = vmatprep.subr.bf16.mxu0 0
        %862 = vmatpush1.bf16.msra.mxu0 0
        %863 = vmatprep.subr.bf16.mxu0 0
        %864 = vmatpush1.bf16.msra.mxu0 0
        %865 = vmatprep.subr.bf16.mxu0 0
        %866 = vmatpush1.bf16.msra.mxu0 0
        %867 = vmatprep.subr.bf16.mxu0 0
        %868 = vmatpush1.bf16.msra.mxu0 0
        %869 = vmatprep.subr.bf16.mxu0 0
        %870 = vmatpush1.bf16.msra.mxu0 0
        %871 = vmatprep.subr.bf16.mxu0 0
        %872 = vmatpush1.bf16.msra.mxu0 0
        %873 = vmatprep.subr.bf16.mxu0 0
        %874 = vmatpush1.bf16.msra.mxu0 0
        %875 = vmatprep.subr.bf16.mxu0 0
        %876 = vmatpush1.bf16.msra.mxu0 0
        %877 = vmatprep.subr.bf16.mxu0 0
        %878 = vmatpush1.bf16.msra.mxu0 0
        %879 = vmatprep.mubr.bf16.mxu0 0
        %880 = vmatmul.mubr.bf16.gmra.mrb[0].mxu0 %v839
        %v881 = vpop.f32.mrb[0].mxu0
        %v882 = vadd.f32 %v773, %v881
        %v883 = vpop.f32.mrb[0].mxu0
        %v884 = vadd.f32 %v773, %v883
        %v885 = vpop.f32.mrb[0].mxu0
        %v886 = vpop.f32.mrb[0].mxu0
        %887 = vdwg.mxu0
        %v888 = vadd.f32 %v882, %v276
        %v889 = vadd.f32 %v884, %v277
        %v890 = vmax.f32 %v888, 0.0
        %v891 = vmax.f32 %v889, 0.0
        %892 = vst [vmem:[%s267] sm:$0xff] %v890
        %893 = vst [vmem:[%s267 + $0x8] sm:$0xff] %v891
        %s894 = sand.u32 %s162, 1
        %s895 = scalar_lea.sflag [#allocation5], %s894
        %s896 = sand.u32 %s162, 1
        %s897 = smul.addr %s896, 16
        %s898 = scalar_lea.vmem [#allocation6], %s897
        // Predicated region
        $region49: #{tpu_custom_call.1} parent=43 // pred_check
          %p899 = pneg %p172
        $region50: #{tpu_custom_call.1} parent=43 // pred_check_branch
          %901 = sbr.rel (%p899) target = $region52
        $region51: #{tpu_custom_call.1} parent=43 // pred_region
          %s903 = ssub.s32 256, 256
          %904 = vsyncadd %s895, %s903
          %s905 = smul.addr %s23, 2
          %s906 = smul.addr %s905, 128
          %s907 = scalar_lea.hbm %s6, %s906
          %s909 = sshll.u32 %s898, 4
          %s910 = int_to_ptr.vmem [resolvable:$true] %s909
          %912 = dma.vmem_to_hbm [thread:$0]  %s910, 256, %s907, %s895
        $region52: #{tpu_custom_call.1} parent=43 // pred_fallthru
          _
      $region44: #{tpu_custom_call.1} parent=5 // pred_fallthru
        _
      %p913 = scmp.le.s32.totalorder 2, %s18
      // Predicated region
      $region53: #{tpu_custom_call.1} parent=5 // pred_check
        %p914 = pneg %p913
      $region54: #{tpu_custom_call.1} parent=5 // pred_check_branch
        %916 = sbr.rel (%p914) target = $region56
      $region55: #{tpu_custom_call.1} parent=5 // pred_region
        %s917 = ssub.s32 %s18, 2
        // Predicated region
        $region57: #{tpu_custom_call.1} parent=55 // pred_check
          %p918 = pneg %p178
        $region58: #{tpu_custom_call.1} parent=55 // pred_check_branch
          %920 = sbr.rel (%p918) target = $region60
        $region59: #{tpu_custom_call.1} parent=55 // pred_region
          %s921 = sand.u32 %s163, 1
          %s922 = scalar_lea.sflag [#allocation5], %s921
          %s923 = sand.u32 %s163, 1
          %s924 = smul.addr %s923, 16
          %s925 = scalar_lea.vmem [#allocation6], %s924
          %926 = dma.done %s922, 256
        $region60: #{tpu_custom_call.1} parent=55 // pred_fallthru
          _
      $region56: #{tpu_custom_call.1} parent=5 // pred_fallthru
        _
    $region6: #{tpu_custom_call.1} parent=1 // loop_footer
      %s22 = sadd.s32 1, %s18
    $region7: #{tpu_custom_call.1} parent=1 // loop_footer_branch
      %17 = sbr.rel target = $region3
    $region8: #{tpu_custom_call.1} parent=1 // loop_exit
      _
    %927 = vsyncpa [#allocation4], 1
    %s928 = scalar_lea.sflag [#allocation4], 1
    %929 = vsyncpa %s928, 1
    %930 = vsyncpa [#allocation5], 1
    %s931 = scalar_lea.sflag [#allocation5], 1
    %932 = vsyncpa %s931, 1

</llo_original>
